<compile_context>
chip_gen: v7x
topology: tpu7x:2x2x1
jax: 0.10.0
libtpu: 0.0.40
codegen_flags: <defaults>
</compile_context>

<pallas_src>
import functools

import jax
import jax.numpy as jnp
from jax import lax
from jax.experimental import pallas as pl
from jax.experimental.pallas import tpu as pltpu


def _round_up(a: int, b: int) -> int:
    return (a + b - 1) // b * b


def _vmem_capacity_bytes() -> int:
    try:
        return int(pltpu.get_tpu_info().vmem_capacity_bytes)
    except Exception:
        return 64 * 1024 * 1024  # conservative: v7x per-TC VMEM


def _pick_tile(dim: int, align: int, cap: int):
    """Choose a block size for `dim`.

    Preference order: full dim (always legal, no padding) -> largest divisor of
    `dim` that is a multiple of `align` and <= cap (no padding) -> aligned tile
    with zero-padding (fallback).  Returns (tile, padded_dim).
    """
    if dim <= cap:
        return dim, dim
    t = (cap // align) * align
    while t >= align:
        if dim % t == 0:
            return t, dim
        t -= align
    n_tiles = -(-dim // cap)
    t = _round_up(-(-dim // n_tiles), align)
    return t, _round_up(dim, t)


def _tile_dot(x, w, mxu_dtype):
    # x: (tm, tk), w: (tn, tk).  Contract K of x with K of W directly
    # (PyTorch weight layout, no materialized transpose) -> MXU, f32 acc.
    if mxu_dtype is not None:
        x = x.astype(mxu_dtype)
        w = w.astype(mxu_dtype)
    return lax.dot_general(
        x, w,
        dimension_numbers=(((1,), (1,)), ((), ())),
        preferred_element_type=jnp.float32,
    )


def _dense_kernel_oneshot(x_ref, w_ref, b_ref, o_ref, *, apply_relu, mxu_dtype):
    # Whole K fits in one block: fused matmul + bias (+ReLU), no scratch.
    y = _tile_dot(x_ref[...], w_ref[...], mxu_dtype)
    y = y + b_ref[...].astype(jnp.float32)
    if apply_relu:
        y = jnp.maximum(y, 0.0)
    o_ref[...] = y.astype(o_ref.dtype)


def _dense_kernel_kacc_out(x_ref, w_ref, b_ref, o_ref, *, apply_relu, mxu_dtype):
    # Multi-K, f32 output: accumulate directly into the resident output block
    # (its index map ignores k).  Saves tm*tn*4 B of VMEM and a finalize copy.
    k = pl.program_id(2)

    @pl.when(k == 0)
    def _():
        o_ref[...] = jnp.zeros_like(o_ref)

    o_ref[...] += _tile_dot(x_ref[...], w_ref[...], mxu_dtype)

    @pl.when(k == pl.num_programs(2) - 1)
    def _():
        y = o_ref[...] + b_ref[...].astype(jnp.float32)
        if apply_relu:
            y = jnp.maximum(y, 0.0)
        o_ref[...] = y


def _dense_kernel_kacc_scratch(x_ref, w_ref, b_ref, o_ref, acc_ref, *,
                               apply_relu, mxu_dtype):
    # Multi-K, low-precision output: keep an f32 accumulator scratch.
    k = pl.program_id(2)

    @pl.when(k == 0)
    def _():
        acc_ref[...] = jnp.zeros_like(acc_ref)

    acc_ref[...] += _tile_dot(x_ref[...], w_ref[...], mxu_dtype)

    @pl.when(k == pl.num_programs(2) - 1)
    def _():
        y = acc_ref[...] + b_ref[...].astype(jnp.float32)
        if apply_relu:
            y = jnp.maximum(y, 0.0)
        o_ref[...] = y.astype(o_ref.dtype)


def dense(x, weight, bias, activation=None, *, tm=None, tn=None, tk=None,
          mxu_dtype=None):
    """Pallas implementation of Dense.forward (nn.Linear + optional ReLU).

    x:      (B, in_features)
    weight: (out_features, in_features)   (PyTorch layout)
    bias:   (out_features,)
    activation: None or "relu"
    mxu_dtype: optional in-kernel operand cast (e.g. jnp.bfloat16) for MXU
               throughput; accumulation stays f32.  Default None = exact dtype.
    """
    B, K = x.shape
    N, Kw = weight.shape
    assert K == Kw, (K, Kw)
    assert bias.shape == (N,)

    in_dtype = jnp.dtype(x.dtype)
    itemsize = in_dtype.itemsize
    out_dtype = in_dtype
    out_itemsize = jnp.dtype(out_dtype).itemsize

    # Minimum sublane multiple depends on operand dtype (f32:8, bf16:16, i8:32).
    sublane = max(8, 32 // itemsize)

    # Tile caps: large enough to amortize HBM re-streaming + per-step overhead,
    # small enough that the double-buffered working set fits every generation's
    # scoped VMEM (incl. v7x's 64 MiB per-TC) with headroom.
    tm_cap = 512
    tn_cap = 1024
    tk_cap = 1024 if itemsize >= 4 else 2048

    if tm is None:
        tm, Bp = _pick_tile(B, sublane, tm_cap)
    else:
        Bp = _round_up(B, tm)
    if tn is None:
        tn, Np = _pick_tile(N, 128, tn_cap)
    else:
        Np = _round_up(N, tn)
    if tk is None:
        tk, Kp = _pick_tile(K, 128, tk_cap)
    else:
        Kp = _round_up(K, tk)

    # Megacore (v7x has 2 TCs): make sure non-trivial problems expose >= 2
    # blocks along a "parallel" axis.  Only split when the halved tile stays
    # legal (multiple of 128 / sublane).  Harmless on 1-TC v5e/v6e.
    if (Bp // tm) * (Np // tn) == 1 and B * N >= 256 * 256:
        if tn % 256 == 0:
            tn //= 2
        elif tm % (2 * sublane) == 0:
            tm //= 2

    grid_m = Bp // tm
    grid_n = Np // tn
    grid_k = Kp // tk

    # Zero-pad only when the chosen tile does not divide the dim (rare).
    xp = x if (Bp == B and Kp == K) else jnp.pad(x, ((0, Bp - B), (0, Kp - K)))
    wp = weight if (Np == N and Kp == K) else jnp.pad(
        weight, ((0, Np - N), (0, Kp - K)))
    bp = (bias if Np == N else jnp.pad(bias, (0, Np - N))).reshape(1, Np)

    apply_relu = (activation == "relu")
    use_scratch = (grid_k > 1) and (out_dtype != jnp.float32)

    # VMEM budget: double-buffered x/w/bias + (double-buffered) output block
    # (+ f32 scratch), with ~25% headroom; capped by physical capacity.
    working = (2 * (tm * tk + tn * tk) * itemsize
               + 2 * tm * tn * out_itemsize
               + 2 * tn * itemsize)
    if use_scratch:
        working += tm * tn * 4
    vmem_cap = _vmem_capacity_bytes()
    vmem_limit = min(max(int(working * 1.25) + (1 << 20), 16 << 20),
                     (vmem_cap * 3) // 4)

    # CostEstimate including HBM re-streaming (w read grid_m times, x grid_n).
    cost = pl.CostEstimate(
        flops=2 * Bp * Np * Kp + Bp * Np,
        transcendentals=0,
        bytes_accessed=(grid_n * Bp * Kp * itemsize
                        + grid_m * Np * Kp * itemsize
                        + Bp * Np * out_itemsize
                        + Np * itemsize),
    )

    if grid_k == 1:
        kernel = functools.partial(_dense_kernel_oneshot,
                                   apply_relu=apply_relu, mxu_dtype=mxu_dtype)
        grid = (grid_m, grid_n)
        in_specs = [
            pl.BlockSpec((tm, tk), lambda i, j: (i, 0)),   # x
            pl.BlockSpec((tn, tk), lambda i, j: (j, 0)),   # weight (N, K)
            pl.BlockSpec((1, tn), lambda i, j: (0, j)),    # bias
        ]
        out_spec = pl.BlockSpec((tm, tn), lambda i, j: (i, j))
        scratch_shapes = []
        dim_sem = ("parallel", "parallel")
    else:
        # NOTE: K must stay the innermost grid axis and "arbitrary"; the
        # k==0 init / k==last finalize pattern depends on it.
        grid = (grid_m, grid_n, grid_k)
        in_specs = [
            pl.BlockSpec((tm, tk), lambda i, j, k: (i, k)),   # x
            pl.BlockSpec((tn, tk), lambda i, j, k: (j, k)),   # weight (N, K)
            pl.BlockSpec((1, tn), lambda i, j, k: (0, j)),    # bias
        ]
        out_spec = pl.BlockSpec((tm, tn), lambda i, j, k: (i, j))
        dim_sem = ("parallel", "parallel", "arbitrary")
        if use_scratch:
            kernel = functools.partial(_dense_kernel_kacc_scratch,
                                       apply_relu=apply_relu,
                                       mxu_dtype=mxu_dtype)
            scratch_shapes = [pltpu.VMEM((tm, tn), jnp.float32)]
        else:
            kernel = functools.partial(_dense_kernel_kacc_out,
                                       apply_relu=apply_relu,
                                       mxu_dtype=mxu_dtype)
            scratch_shapes = []

    out_padded = pl.pallas_call(
        kernel,
        out_shape=jax.ShapeDtypeStruct((Bp, Np), out_dtype),
        grid_spec=pltpu.PrefetchScalarGridSpec(
            num_scalar_prefetch=0,
            grid=grid,
            in_specs=in_specs,
            out_specs=out_spec,
            scratch_shapes=scratch_shapes,
        ),
        compiler_params=pltpu.CompilerParams(
            dimension_semantics=dim_sem,
            vmem_limit_bytes=vmem_limit,
        ),
        cost_estimate=cost,
    )(xp, wp, bp)

    if Bp == B and Np == N:
        return out_padded
    return out_padded[:B, :N]


def _reference_dense(x, weight, bias, activation=None, precision=None):
    y = jnp.matmul(x, weight.T, precision=precision) + bias
    if activation == "relu":
        y = jnp.maximum(y, 0.0)
    return y


if __name__ == "__main__":
    key = jax.random.PRNGKey(0)
    k_x, k_w, k_b = jax.random.split(key, 3)

    # Small shapes matching the module's typical use (Dense(in, out)).
    batch = 8
    in_features = 32
    out_features = 16

    x = jax.random.normal(k_x, (batch, in_features), dtype=jnp.float32)
    # Deterministic "Kaiming-uniform-like" init (synthetic, not a checkpoint).
    bound = 1.0 / (in_features ** 0.5)
    weight = jax.random.uniform(
        k_w, (out_features, in_features), minval=-bound, maxval=bound,
        dtype=jnp.float32)
    bias = jax.random.uniform(
        k_b, (out_features,), minval=-bound, maxval=bound, dtype=jnp.float32)

    # activation=None (Dense(in, out)) and relu (Dense(in, out, F.relu)) cases.
    out_none = jax.block_until_ready(dense(x, weight, bias, activation=None))
    out_relu = jax.block_until_ready(dense(x, weight, bias, activation="relu"))

    ref_none = _reference_dense(x, weight, bias, activation=None)
    ref_relu = _reference_dense(x, weight, bias, activation="relu")

    assert out_none.shape == (batch, out_features)
    assert out_relu.shape == (batch, out_features)
    assert jnp.allclose(out_none, ref_none, atol=1e-5, rtol=1e-5)
    assert jnp.allclose(out_relu, ref_relu, atol=1e-5, rtol=1e-5)

    # Non-aligned single-tile shape (now handled without any jnp.pad / slice:
    # full-dim blocks are legal even when not (8,128)-aligned).
    kb_x, kb_w, kb_b = jax.random.split(jax.random.PRNGKey(1), 3)
    Bb, Kb, Nb = 200, 384, 300
    xb = jax.random.normal(kb_x, (Bb, Kb), dtype=jnp.float32)
    wb = jax.random.normal(kb_w, (Nb, Kb), dtype=jnp.float32) * 0.05
    bb = jax.random.normal(kb_b, (Nb,), dtype=jnp.float32)
    out_big = jax.block_until_ready(dense(xb, wb, bb, activation="relu"))
    ref_big = _reference_dense(xb, wb, bb, activation="relu")
    assert jnp.allclose(out_big, ref_big, atol=1e-3, rtol=1e-3)

    # Multi-tile shape exercising the 3-D grid (K accumulation into the
    # resident output block) and the >=2-parallel-blocks (megacore) split.
    kc_x, kc_w, kc_b = jax.random.split(jax.random.PRNGKey(2), 3)
    Bc, Kc, Nc = 256, 2304, 512
    xc = jax.random.normal(kc_x, (Bc, Kc), dtype=jnp.float32)
    wc = jax.random.normal(kc_w, (Nc, Kc), dtype=jnp.float32) * 0.02
    bc = jax.random.normal(kc_b, (Nc,), dtype=jnp.float32)
    out_acc = jax.block_until_ready(dense(xc, wc, bc, activation="relu"))
    ref_acc = _reference_dense(xc, wc, bc, activation="relu",
                               precision=jax.lax.Precision.HIGHEST)
    assert jnp.allclose(out_acc, ref_acc, atol=5e-3, rtol=5e-3)

    print("KERNEL_OK")
</pallas_src>

<mosaic_0001>
module attributes {stable_mosaic.version = 11 : i64} {
  func.func @_dense_kernel_oneshot(%arg0: i32, %arg1: i32, %arg2: memref<8x32xf32, #tpu.memory_space<vmem>>, %arg3: memref<16x32xf32, #tpu.memory_space<vmem>>, %arg4: memref<1x16xf32, #tpu.memory_space<vmem>>, %arg5: memref<8x16xf32, #tpu.memory_space<vmem>>) attributes {dimension_semantics = [#tpu.dimension_semantics<parallel>, #tpu.dimension_semantics<parallel>], iteration_bounds = array<i64: 1, 1>, scalar_prefetch = 0 : i64, scratch_operands = 0 : i64, tpu.core_type = #tpu.core_type<tc>, window_params = [{transform_indices = @transform_0, window_bounds = array<i64: 8, 32>}, {transform_indices = @transform_1, window_bounds = array<i64: 16, 32>}, {transform_indices = @transform_2, window_bounds = array<i64: 1, 16>}, {transform_indices = @transform_3, window_bounds = array<i64: 8, 16>}]} {
    %c0 = arith.constant 0 : index
    %c0_0 = arith.constant 0 : index
    %0 = vector.load %arg2[%c0, %c0_0] : memref<8x32xf32, #tpu.memory_space<vmem>>, vector<8x32xf32>
    %c0_1 = arith.constant 0 : index
    %c0_2 = arith.constant 0 : index
    %1 = vector.load %arg3[%c0_1, %c0_2] : memref<16x32xf32, #tpu.memory_space<vmem>>, vector<16x32xf32>
    %cst = arith.constant dense<0.000000e+00> : vector<8x16xf32>
    %2 = tpu.matmul %0, %1, %cst {dimension_numbers = #tpu.dot_dimension_numbers<[1], [1], [0], [0], [0, 0, 1, 0], [], []>} : vector<8x32xf32>, vector<16x32xf32>, vector<8x16xf32> -> vector<8x16xf32>
    %c0_3 = arith.constant 0 : index
    %c0_4 = arith.constant 0 : index
    %3 = vector.load %arg4[%c0_3, %c0_4] : memref<1x16xf32, #tpu.memory_space<vmem>>, vector<1x16xf32>
    %4 = vector.broadcast %3 : vector<1x16xf32> to vector<8x16xf32>
    %5 = arith.addf %2, %4 : vector<8x16xf32>
    %c0_5 = arith.constant 0 : index
    %c0_6 = arith.constant 0 : index
    %6 = vector.load %arg5[%c0_5, %c0_6] : memref<8x16xf32, #tpu.memory_space<vmem>>, vector<8x16xf32>
    tpu.vector_store %arg5[%c0_5, %c0_6], %5 {strides = array<i32>} : memref<8x16xf32, #tpu.memory_space<vmem>>, vector<8x16xf32>,
    return
  }
  func.func @transform_0(%arg0: i32, %arg1: i32) -> (i32, i32) {
    %c0_i32 = arith.constant 0 : i32
    %c0_i32_0 = arith.constant 0 : i32
    return %arg0, %c0_i32 : i32, i32
  }
  func.func @transform_1(%arg0: i32, %arg1: i32) -> (i32, i32) {
    %c0_i32 = arith.constant 0 : i32
    %c0_i32_0 = arith.constant 0 : i32
    return %arg1, %c0_i32 : i32, i32
  }
  func.func @transform_2(%arg0: i32, %arg1: i32) -> (i32, i32) {
    %c0_i32 = arith.constant 0 : i32
    %c0_i32_0 = arith.constant 0 : i32
    return %c0_i32, %arg1 : i32, i32
  }
  func.func @transform_3(%arg0: i32, %arg1: i32) -> (i32, i32) {
    %c0_i32 = arith.constant 0 : i32
    return %arg0, %arg1 : i32, i32
  }
}

</mosaic_0001>

<llo_original>
// kernel: tpu_custom_call.1
$region0: #{tpu_custom_call.1}
  #allocation0 [shape = 'u32[]', space=smem, size = 0x4, offset = 0x4, fixed_abs, tag = 'smem constant byte address 0x4 - core index']
  #allocation1 [shape = 'u32[144,128]{1,0:T(1,128)}', space=vmem, size = 0x12000, scoped, tag = 'internal scratch']
  %s0 = inlined_call_operand.hbm [shape: f32[8,32], index: 0, kind: input, shape index: {}]
  %s1 = inlined_call_operand.hbm [shape: f32[16,32], index: 1, kind: input, shape index: {}]
  %s2 = inlined_call_operand.vmem [shape: f32[1,16], index: 2, kind: input, shape index: {}]
  %s3 = inlined_call_operand.hbm [shape: f32[8,16], index: 3, kind: output, shape index: {}]
  %s4 = sld [smem:[#allocation0]]
  $region30: #{tpu_custom_call.1} parent=0
    _
  %s6 = ssub.s32 1, %s4
  %s7 = scalar_select 0, %s6, %s4
  $region1: #{tpu_custom_call.1} parent=0
    #allocation2 [shape = 'u8[4096]{0}', space=vmem, size = 0x1000, scoped, tag = 'input window, operand 0, single buffered']
    #allocation3 [shape = 's32[1]{0}', space=sflag, size = 0x4, scoped, tag = 'scoped memory for tpu_custom_call.1']
    #allocation4 [shape = 's32[1]{0}', space=sflag, size = 0x4, scoped, tag = 'scoped memory for tpu_custom_call.1']
    #allocation5 [shape = 'u8[8192]{0}', space=vmem, size = 0x2000, scoped, tag = 'input window, operand 1, single buffered']
    #allocation6 [shape = 's32[1]{0}', space=sflag, size = 0x4, scoped, tag = 'scoped memory for tpu_custom_call.1']
    #allocation7 [shape = 'u8[4096]{0}', space=vmem, size = 0x1000, scoped, tag = 'output window, operand 0, single buffered']
    %8 = vsyncpa [#allocation3], 0
    %9 = vsyncpa [#allocation6], 0
    %10 = vsyncpa [#allocation4], 0
    // Predicated region
    $region2: #{tpu_custom_call.1} parent=1 // pred_check
      _
    $region3: #{tpu_custom_call.1} parent=1 // pred_check_branch
      %12 = sbr.rel (0) target = $region5
    $region4: #{tpu_custom_call.1} parent=1 // pred_region
      %s14 = ssub.s32 128, 128
      %15 = vsyncadd [#allocation3], %s14
      %s17 = sshll.u32 [#allocation2], 4
      %s18 = int_to_ptr.vmem [resolvable:$true] %s17
      %20 = dma.hbm_to_vmem [thread:$0]  %s0, 128, %s18, [#allocation3]
    $region5: #{tpu_custom_call.1} parent=1 // pred_fallthru
      _
    // Predicated region
    $region6: #{tpu_custom_call.1} parent=1 // pred_check
      _
    $region7: #{tpu_custom_call.1} parent=1 // pred_check_branch
      %22 = sbr.rel (0) target = $region9
    $region8: #{tpu_custom_call.1} parent=1 // pred_region
      %s24 = ssub.s32 256, 256
      %25 = vsyncadd [#allocation6], %s24
      %s26 = sshll.u32 [#allocation5], 4
      %s27 = int_to_ptr.vmem [resolvable:$true] %s26
      %32 = dma.hbm_to_vmem [thread:$0]  %s1, 256, %s27, [#allocation6], 128, 128, 8
    $region9: #{tpu_custom_call.1} parent=1 // pred_fallthru
      _
    // Predicated region
    $region10: #{tpu_custom_call.1} parent=1 // pred_check
      _
    $region11: #{tpu_custom_call.1} parent=1 // pred_check_branch
      %34 = sbr.rel (0) target = $region13
    $region12: #{tpu_custom_call.1} parent=1 // pred_region
      _
    $region13: #{tpu_custom_call.1} parent=1 // pred_fallthru
      _
    // Predicated region
    $region14: #{tpu_custom_call.1} parent=1 // pred_check
      _
    $region15: #{tpu_custom_call.1} parent=1 // pred_check_branch
      %36 = sbr.rel (0) target = $region17
    $region16: #{tpu_custom_call.1} parent=1 // pred_region
      %37 = dma.done [#allocation3], 128
    $region17: #{tpu_custom_call.1} parent=1 // pred_fallthru
      _
    // Predicated region
    $region18: #{tpu_custom_call.1} parent=1 // pred_check
      _
    $region19: #{tpu_custom_call.1} parent=1 // pred_check_branch
      %39 = sbr.rel (0) target = $region21
    $region20: #{tpu_custom_call.1} parent=1 // pred_region
      %40 = dma.done [#allocation6], 256
    $region21: #{tpu_custom_call.1} parent=1 // pred_fallthru
      _
    %v41 = vld [vmem:[#allocation2] sm:$0xff]
    %v42 = vld [vmem:[#allocation5] sm:$0xff]
    %v43 = vld [vmem:[#allocation5 + $0x8] sm:$0xff]
    %v44 = vld [vmem:[%s2] sm:$0x1]
    %v46 = vlaneseq
    %v47 = vshrl.u32 %v46, 7
    %v48 = vsub.s32 0, %v47
    %v49 = vrot.slane %v44, %v48
    %vm51 = vcmask 261120
    %v53 = vsel %vm51, %v41, 0
    %v56 = vsel %vm51, %v42, 0
    %v59 = vsel %vm51, %v43, 0
    %61 = vmatprep.subr.mxu0 0.0
    %62 = vmatpush1.xpose.msra.mxu0 %v56
    %63 = vmatprep.subr.mxu0 0.0
    %64 = vmatpush1.xpose.msra.mxu0 %v59
    %65 = vmatprep.subr.mxu0 0.0
    %66 = vmatpush1.xpose.msra.mxu0 0.0
    %67 = vmatprep.subr.mxu0 0.0
    %68 = vmatpush1.xpose.msra.mxu0 0.0
    %69 = vmatprep.subr.mxu0 0.0
    %70 = vmatpush1.xpose.msra.mxu0 0.0
    %71 = vmatprep.subr.mxu0 0.0
    %72 = vmatpush1.xpose.msra.mxu0 0.0
    %73 = vmatprep.subr.mxu0 0.0
    %74 = vmatpush1.xpose.msra.mxu0 0.0
    %75 = vmatprep.subr.mxu0 0.0
    %76 = vmatpush1.xpose.msra.mxu0 0.0
    %77 = vmatprep.subr.mxu0 0.0
    %78 = vmatpush1.xpose.msra.mxu0 0.0
    %79 = vmatprep.subr.mxu0 0.0
    %80 = vmatpush1.xpose.msra.mxu0 0.0
    %81 = vmatprep.subr.mxu0 0.0
    %82 = vmatpush1.xpose.msra.mxu0 0.0
    %83 = vmatprep.subr.mxu0 0.0
    %84 = vmatpush1.xpose.msra.mxu0 0.0
    %85 = vmatprep.subr.mxu0 0.0
    %86 = vmatpush1.xpose.msra.mxu0 0.0
    %87 = vmatprep.subr.mxu0 0.0
    %88 = vmatpush1.xpose.msra.mxu0 0.0
    %89 = vmatprep.subr.mxu0 0.0
    %90 = vmatpush1.xpose.msra.mxu0 0.0
    %91 = vmatprep.subr.mxu0 0.0
    %92 = vmatpush1.xpose.msra.mxu0 0.0
    %93 = vmatprep.subr.mxu0 0.0
    %94 = vmatpush1.xpose.msra.mxu0 0.0
    %95 = vmatprep.subr.mxu0 0.0
    %96 = vmatpush1.xpose.msra.mxu0 0.0
    %97 = vmatprep.subr.mxu0 0.0
    %98 = vmatpush1.xpose.msra.mxu0 0.0
    %99 = vmatprep.subr.mxu0 0.0
    %100 = vmatpush1.xpose.msra.mxu0 0.0
    %101 = vmatprep.subr.mxu0 0.0
    %102 = vmatpush1.xpose.msra.mxu0 0.0
    %103 = vmatprep.subr.mxu0 0.0
    %104 = vmatpush1.xpose.msra.mxu0 0.0
    %105 = vmatprep.subr.mxu0 0.0
    %106 = vmatpush1.xpose.msra.mxu0 0.0
    %107 = vmatprep.subr.mxu0 0.0
    %108 = vmatpush1.xpose.msra.mxu0 0.0
    %109 = vmatprep.subr.mxu0 0.0
    %110 = vmatpush1.xpose.msra.mxu0 0.0
    %111 = vmatprep.subr.mxu0 0.0
    %112 = vmatpush1.xpose.msra.mxu0 0.0
    %113 = vmatprep.subr.mxu0 0.0
    %114 = vmatpush1.xpose.msra.mxu0 0.0
    %115 = vmatprep.subr.mxu0 0.0
    %116 = vmatpush1.xpose.msra.mxu0 0.0
    %117 = vmatprep.subr.mxu0 0.0
    %118 = vmatpush1.xpose.msra.mxu0 0.0
    %119 = vmatprep.subr.mxu0 0.0
    %120 = vmatpush1.xpose.msra.mxu0 0.0
    %121 = vmatprep.subr.mxu0 0.0
    %122 = vmatpush1.xpose.msra.mxu0 0.0
    %123 = vmatprep.subr.mxu0 0.0
    %124 = vmatpush1.xpose.msra.mxu0 0.0
    %125 = vmatprep.mubr.f32.mxu0 0.0
    %126 = vmatmul.mubr.f32.gmra.mrb[0].mxu0 %v53
    %v127 = vpop.f32.mrb[0].mxu0
    %v128 = vadd.f32 %v49, %v127
    %v129 = vpop.f32.mrb[0].mxu0
    %130 = vdwg.mxu0
    %vm131 = vcmask 130048
    %132 = vst.msk [vmem:[#allocation7] sm:$0xff] %vm131, %v128
    // Predicated region
    $region22: #{tpu_custom_call.1} parent=1 // pred_check
      _
    $region23: #{tpu_custom_call.1} parent=1 // pred_check_branch
      %134 = sbr.rel (0) target = $region25
    $region24: #{tpu_custom_call.1} parent=1 // pred_region
      %s136 = ssub.s32 128, 128
      %137 = vsyncadd [#allocation4], %s136
      %s139 = sshll.u32 [#allocation7], 4
      %s140 = int_to_ptr.vmem [resolvable:$true] %s139
      %142 = dma.vmem_to_hbm [thread:$0]  %s140, 128, %s3, [#allocation4]
    $region25: #{tpu_custom_call.1} parent=1 // pred_fallthru
      _
    // Predicated region
    $region26: #{tpu_custom_call.1} parent=1 // pred_check
      _
    $region27: #{tpu_custom_call.1} parent=1 // pred_check_branch
      %144 = sbr.rel (0) target = $region29
    $region28: #{tpu_custom_call.1} parent=1 // pred_region
      %145 = dma.done [#allocation4], 128
    $region29: #{tpu_custom_call.1} parent=1 // pred_fallthru
      _
    %146 = vsyncpa [#allocation3], 1
    %147 = vsyncpa [#allocation6], 1
    %148 = vsyncpa [#allocation4], 1

</llo_original>
